<compile_context>
chip_gen: v5e
topology: v5e:2x2
jax: 0.10.0
libtpu: 0.0.40
codegen_flags: <defaults>
</compile_context>

<pallas_src>
import jax
import jax.numpy as jnp
from jax.experimental import pallas as pl
from jax.experimental.pallas import tpu as pltpu


def _spatial_attention_kernel(params_ref, x_ref, o_ref):
    # params_ref : SMEM f32[6] = [w00/C, w01, w10/C, w11, b0, b1]
    #              (eval-BN and the mean's 1/C already folded in)
    # x_ref      : VMEM [1, C, h_tile, W]
    # o_ref      : VMEM [1, 2, h_tile, W]
    x = x_ref[0].astype(jnp.float32)                 # (C, h_tile, W)

    s = jnp.sum(x, axis=0)                           # channel sum (mean folded into w)
    mx = jnp.max(x, axis=0)                          # channel max

    w00 = params_ref[0]
    w01 = params_ref[1]
    w10 = params_ref[2]
    w11 = params_ref[3]
    b0 = params_ref[4]
    b1 = params_ref[5]

    # 1x1 conv on the 2-channel [avg, max] map == per-pixel scalar FMAs (VPU).
    y0 = w00 * s + w01 * mx + b0                     # (h_tile, W)
    y1 = w10 * s + w11 * mx + b1                     # (h_tile, W)

    # Fused ReLU + sigmoid, two direct slice stores (no concat intermediate).
    o_ref[0, 0, :, :] = jax.nn.sigmoid(jnp.maximum(y0, 0.0)).astype(o_ref.dtype)
    o_ref[0, 1, :, :] = jax.nn.sigmoid(jnp.maximum(y1, 0.0)).astype(o_ref.dtype)


def _pick_h_tile(H, C, W, itemsize, target_bytes=2 * 1024 * 1024):
    """Largest h_tile dividing H (multiple of 8 unless == H) with the per-block
    input DMA <= ~2 MiB, so double-buffering fits v7x's smaller VMEM."""
    if H % 8 != 0:
        return H
    h = H
    while h % 2 == 0 and (h // 2) % 8 == 0 and h * C * W * itemsize > target_bytes:
        h //= 2
    return h


@jax.jit
def spatial_attention(x_nchw, conv_w, conv_b, bn_gamma, bn_beta, bn_mean, bn_var):
    """x_nchw: (N, C, H, W).  Returns (N, 2, H, W) float32."""
    N, C, H, W = x_nchw.shape
    eps = 1e-5

    # Fold eval-mode BatchNorm into the 1x1 conv, and the mean's 1/C into the
    # "avg" input column (input channel 0 of the 2-channel [avg, max] map):
    #   bn(conv(z)) = (W z + b - mean) * gamma / sqrt(var + eps) + beta
    scale = bn_gamma / jnp.sqrt(bn_var + eps)                   # (2,)
    eff_w = conv_w.reshape(2, 2) * scale[:, None]               # (out, in)
    eff_w = eff_w.at[:, 0].multiply(1.0 / C)                    # avg -> sum
    eff_b = (conv_b - bn_mean) * scale + bn_beta                # (2,)
    params = jnp.concatenate([eff_w.reshape(-1), eff_b]).astype(jnp.float32)  # (6,)

    h_tile = _pick_h_tile(H, C, W, x_nchw.dtype.itemsize)
    grid = (N, H // h_tile)

    out = pl.pallas_call(
        _spatial_attention_kernel,
        out_shape=jax.ShapeDtypeStruct((N, 2, H, W), jnp.float32),
        grid=grid,
        in_specs=[
            # Folded conv/BN scalars, whole array resident in SMEM.
            pl.BlockSpec(memory_space=pltpu.MemorySpace.SMEM),
            # One (image, row-tile) block per grid step; C kept whole in-block.
            pl.BlockSpec((1, C, h_tile, W), lambda n, h: (n, 0, h, 0)),
        ],
        out_specs=pl.BlockSpec((1, 2, h_tile, W), lambda n, h: (n, 0, h, 0)),
        compiler_params=pltpu.CompilerParams(
            dimension_semantics=("parallel", "parallel")),
    )(params, x_nchw)
    return out


def _reference(x_nchw, conv_w, conv_b, bn_gamma, bn_beta, bn_mean, bn_var):
    eps = 1e-5
    avg = jnp.mean(x_nchw, axis=1, keepdims=True)
    mx = jnp.max(x_nchw, axis=1, keepdims=True)
    y = jnp.concatenate([avg, mx], axis=1)                      # (N, 2, H, W)
    w = conv_w.reshape(2, 2)
    conv = jnp.einsum("oc,nchw->nohw", w, y) + conv_b[None, :, None, None]
    bn = (conv - bn_mean[None, :, None, None]) / jnp.sqrt(
        bn_var[None, :, None, None] + eps
    ) * bn_gamma[None, :, None, None] + bn_beta[None, :, None, None]
    return jax.nn.sigmoid(jnp.maximum(bn, 0.0))


if __name__ == "__main__":
    key = jax.random.PRNGKey(0)
    k_x, k_w, k_b, k_m, k_v = jax.random.split(key, 5)

    N, C, H, W = 2, 4, 16, 16
    x = jax.random.normal(k_x, (N, C, H, W), dtype=jnp.float32)

    # Deterministic parameter init (Conv2d(2, 2, 1) + BatchNorm2d(2), eval mode).
    conv_w = jax.random.normal(k_w, (2, 2, 1, 1), dtype=jnp.float32) * 0.5
    conv_b = jax.random.normal(k_b, (2,), dtype=jnp.float32) * 0.1
    bn_gamma = jnp.ones((2,), dtype=jnp.float32)
    bn_beta = jnp.zeros((2,), dtype=jnp.float32)
    bn_mean = jax.random.normal(k_m, (2,), dtype=jnp.float32) * 0.1
    bn_var = jnp.abs(jax.random.normal(k_v, (2,), dtype=jnp.float32)) + 0.5

    out = spatial_attention(x, conv_w, conv_b, bn_gamma, bn_beta, bn_mean, bn_var)
    out = jax.block_until_ready(out)

    ref = _reference(x, conv_w, conv_b, bn_gamma, bn_beta, bn_mean, bn_var)
    assert out.shape == (N, 2, H, W)
    assert jnp.allclose(out, ref, atol=1e-5, rtol=1e-5), "mismatch vs reference"

    print("KERNEL_OK")
</pallas_src>

<mosaic_0001>
module attributes {stable_mosaic.version = 11 : i64} {
  func.func @_spatial_attention_kernel(%arg0: i32, %arg1: i32, %arg2: memref<6xf32, #tpu.memory_space<smem>>, %arg3: memref<1x4x16x16xf32, #tpu.memory_space<vmem>>, %arg4: memref<1x2x16x16xf32, #tpu.memory_space<vmem>>) attributes {dimension_semantics = [#tpu.dimension_semantics<parallel>, #tpu.dimension_semantics<parallel>], iteration_bounds = array<i64: 2, 1>, scalar_prefetch = 0 : i64, scratch_operands = 0 : i64, tpu.core_type = #tpu.core_type<tc>, window_params = [{transform_indices = @transform_0, window_bounds = array<i64: 6>}, {transform_indices = @transform_1, window_bounds = array<i64: 1, 4, 16, 16>}, {transform_indices = @transform_2, window_bounds = array<i64: 1, 2, 16, 16>}]} {
    %c0 = arith.constant 0 : index
    %c0_0 = arith.constant 0 : index
    %c0_1 = arith.constant 0 : index
    %c0_2 = arith.constant 0 : index
    %0 = vector.load %arg3[%c0, %c0_0, %c0_1, %c0_2] : memref<1x4x16x16xf32, #tpu.memory_space<vmem>>, vector<1x4x16x16xf32>
    %1 = vector.shape_cast %0 : vector<1x4x16x16xf32> to vector<4x16x16xf32>
    %cst = arith.constant dense<0.000000e+00> : vector<16x16xf32>
    %2 = vector.multi_reduction <add>, %1, %cst [0] : vector<4x16x16xf32> to vector<16x16xf32>
    %cst_3 = arith.constant dense<0xFF800000> : vector<16x16xf32>
    %3 = vector.multi_reduction <maximumf>, %1, %cst_3 [0] : vector<4x16x16xf32> to vector<16x16xf32>
    %c0_4 = arith.constant 0 : index
    %4 = memref.load %arg2[%c0_4] : memref<6xf32, #tpu.memory_space<smem>>
    %c1 = arith.constant 1 : index
    %5 = memref.load %arg2[%c1] : memref<6xf32, #tpu.memory_space<smem>>
    %c2 = arith.constant 2 : index
    %6 = memref.load %arg2[%c2] : memref<6xf32, #tpu.memory_space<smem>>
    %c3 = arith.constant 3 : index
    %7 = memref.load %arg2[%c3] : memref<6xf32, #tpu.memory_space<smem>>
    %c4 = arith.constant 4 : index
    %8 = memref.load %arg2[%c4] : memref<6xf32, #tpu.memory_space<smem>>
    %c5 = arith.constant 5 : index
    %9 = memref.load %arg2[%c5] : memref<6xf32, #tpu.memory_space<smem>>
    %10 = vector.broadcast %4 : f32 to vector<16x16xf32>
    %11 = arith.mulf %10, %2 : vector<16x16xf32>
    %12 = vector.broadcast %5 : f32 to vector<16x16xf32>
    %13 = arith.mulf %12, %3 : vector<16x16xf32>
    %14 = arith.addf %11, %13 : vector<16x16xf32>
    %15 = vector.broadcast %8 : f32 to vector<16x16xf32>
    %16 = arith.addf %14, %15 : vector<16x16xf32>
    %17 = vector.broadcast %6 : f32 to vector<16x16xf32>
    %18 = arith.mulf %17, %2 : vector<16x16xf32>
    %19 = vector.broadcast %7 : f32 to vector<16x16xf32>
    %20 = arith.mulf %19, %3 : vector<16x16xf32>
    %21 = arith.addf %18, %20 : vector<16x16xf32>
    %22 = vector.broadcast %9 : f32 to vector<16x16xf32>
    %23 = arith.addf %21, %22 : vector<16x16xf32>
    %cst_5 = arith.constant 0.000000e+00 : f32
    %24 = vector.broadcast %cst_5 : f32 to vector<16x16xf32>
    %25 = arith.maximumf %16, %24 : vector<16x16xf32>
    %26 = arith.negf %25 : vector<16x16xf32>
    %27 = math.exp %26 : vector<16x16xf32>
    %cst_6 = arith.constant 1.000000e+00 : f32
    %28 = vector.broadcast %cst_6 : f32 to vector<16x16xf32>
    %29 = arith.addf %28, %27 : vector<16x16xf32>
    %30 = arith.divf %28, %29 : vector<16x16xf32>
    %c0_7 = arith.constant 0 : index
    %c0_8 = arith.constant 0 : index
    %c0_9 = arith.constant 0 : index
    %c0_10 = arith.constant 0 : index
    %31 = vector.load %arg4[%c0_7, %c0_8, %c0_9, %c0_10] : memref<1x2x16x16xf32, #tpu.memory_space<vmem>>, vector<1x1x16x16xf32>
    %32 = vector.shape_cast %31 : vector<1x1x16x16xf32> to vector<16x16xf32>
    %33 = vector.shape_cast %30 : vector<16x16xf32> to vector<1x1x16x16xf32>
    tpu.vector_store %arg4[%c0_7, %c0_8, %c0_9, %c0_10], %33 {strides = array<i32>} : memref<1x2x16x16xf32, #tpu.memory_space<vmem>>, vector<1x1x16x16xf32>,
    %cst_11 = arith.constant 0.000000e+00 : f32
    %34 = vector.broadcast %cst_11 : f32 to vector<16x16xf32>
    %35 = arith.maximumf %23, %34 : vector<16x16xf32>
    %36 = arith.negf %35 : vector<16x16xf32>
    %37 = math.exp %36 : vector<16x16xf32>
    %cst_12 = arith.constant 1.000000e+00 : f32
    %38 = vector.broadcast %cst_12 : f32 to vector<16x16xf32>
    %39 = arith.addf %38, %37 : vector<16x16xf32>
    %40 = arith.divf %38, %39 : vector<16x16xf32>
    %c0_13 = arith.constant 0 : index
    %c1_14 = arith.constant 1 : index
    %c0_15 = arith.constant 0 : index
    %c0_16 = arith.constant 0 : index
    %41 = vector.load %arg4[%c0_13, %c1_14, %c0_15, %c0_16] : memref<1x2x16x16xf32, #tpu.memory_space<vmem>>, vector<1x1x16x16xf32>
    %42 = vector.shape_cast %41 : vector<1x1x16x16xf32> to vector<16x16xf32>
    %43 = vector.shape_cast %40 : vector<16x16xf32> to vector<1x1x16x16xf32>
    tpu.vector_store %arg4[%c0_13, %c1_14, %c0_15, %c0_16], %43 {strides = array<i32>} : memref<1x2x16x16xf32, #tpu.memory_space<vmem>>, vector<1x1x16x16xf32>,
    return
  }
  func.func @transform_0(%arg0: i32, %arg1: i32) -> i32 {
    %c0_i32 = arith.constant 0 : i32
    %c0_i32_0 = arith.constant 0 : i32
    return %c0_i32 : i32
  }
  func.func @transform_1(%arg0: i32, %arg1: i32) -> (i32, i32, i32, i32) {
    %c0_i32 = arith.constant 0 : i32
    %c0_i32_0 = arith.constant 0 : i32
    %c0_i32_1 = arith.constant 0 : i32
    return %arg0, %c0_i32, %arg1, %c0_i32_0 : i32, i32, i32, i32
  }
  func.func @transform_2(%arg0: i32, %arg1: i32) -> (i32, i32, i32, i32) {
    %c0_i32 = arith.constant 0 : i32
    %c0_i32_0 = arith.constant 0 : i32
    %c0_i32_1 = arith.constant 0 : i32
    return %arg0, %c0_i32, %arg1, %c0_i32_0 : i32, i32, i32, i32
  }
}

</mosaic_0001>

<llo_original>
// kernel: spatial_attention.1
$region0: #{spatial_attention.1}
  #allocation0 [shape = 'u32[]', space=smem, size = 0x4, offset = 0x4, fixed_abs, tag = 'smem constant byte address 0x4 - core index']
  #allocation1 [shape = 'u32[72,128]{1,0:T(1,128)}', space=vmem, size = 0x9000, scoped, tag = 'internal scratch']
  %s0 = inlined_call_operand.vmem [shape: f32[6], index: 0, kind: input, shape index: {}]
  %s1 = inlined_call_operand.hbm [shape: f32[2,4,16,16], index: 1, kind: input, shape index: {}]
  %s2 = inlined_call_operand.hbm [shape: f32[2,2,16,16], index: 2, kind: output, shape index: {}]
  %s3 = sld [smem:[#allocation0]]
  $region49: #{spatial_attention.1} parent=0
    _
  %s5 = ssub.s32 1, %s3
  %s6 = scalar_select 0, %s5, %s3
  $region1: #{spatial_attention.1} parent=0
    #allocation2 [shape = 'u8[512]{0}', space=smem, size = 0x200, scoped, tag = 'input window, operand 0, single buffered']
    #allocation3 [shape = 's32[2]{0}', space=sflag, size = 0x8, scoped, tag = 'scoped memory for spatial_attention.1']
    #allocation4 [shape = 's32[2]{0}', space=sflag, size = 0x8, scoped, tag = 'scoped memory for spatial_attention.1']
    #allocation5 [shape = 's32[2]{0}', space=sflag, size = 0x8, scoped, tag = 'scoped memory for spatial_attention.1']
    #allocation6 [shape = 'u8[65536]{0}', space=vmem, size = 0x10000, scoped, tag = 'input window, operand 1']
    #allocation7 [shape = 'u8[32768]{0}', space=vmem, size = 0x8000, scoped, tag = 'output window, operand 0']
    %7 = vsyncpa [#allocation5], 0
    %8 = vsyncpa [#allocation3], 0
    %s9 = scalar_lea.sflag [#allocation3], 1
    %10 = vsyncpa %s9, 0
    %11 = vsyncpa [#allocation4], 0
    %s12 = scalar_lea.sflag [#allocation4], 1
    %13 = vsyncpa %s12, 0
    loop: start=0, step=1, limit=4
    $region2: #{spatial_attention.1} parent=1 // loop_pre_header
      _
    $region3: #{spatial_attention.1} parent=1 // loop_header
      %s15 = sphi 0, %s19
      %p16 = scmp.ge.s32.totalorder %s15, 4
      %s22 = sphi 0, %s34
      %s23 = sphi 0, %s30
      %s24 = sphi 0, %s22
      %s25 = sphi 0, %s23
      %s26 = sphi 0, %s24
      %s27 = sphi 0, %s25
      %s35 = sphi 0, %s35
      %s37 = sphi 0, %s35
      %s38 = sphi 0, %s37
      %s52 = sphi 0, %s38
      %s60 = sphi 0, %s62
      %s63 = sphi 0, %s60
      %s64 = sphi 0, %s63
      %s80 = sphi 0, %s64
      %s88 = sphi 0, %s90
      %s91 = sphi 0, %s88
      %s92 = sphi 0, %s91
      %s108 = sphi 0, %s92
    $region4: #{spatial_attention.1} parent=1 // loop_header_branch
      %18 = sbr.rel (%p16) target = $region8
    $region5: #{spatial_attention.1} parent=1 // loop_body
      %s20 = ssub.s32 %s15, 1
      %s21 = ssub.s32 %s15, 2
      %s28 = sadd.s32 1, %s23
      %p29 = scmp.ge.s32.totalorder %s28, 1
      %s30 = scalar_select %p29, 0, %s28
      %s31 = sadd.s32 1, %s22
      %s32 = scalar_select %p29, %s31, %s22
      %p33 = scmp.ge.s32.totalorder %s32, 2
      %s34 = scalar_select %p33, 0, %s32
      %s36 = sadd.s32 %s35, 1
      %p39 = scmp.eq.s32.totalorder %s15, 1
      %p40 = scmp.ne.s32.totalorder %s35, %s37
      %p41 = scmp.eq.s32.totalorder %s15, 0
      %p42 = por %p40, %p41
      %p43 = scmp.ne.s32.totalorder %s35, %s37
      %p44 = scmp.eq.s32.totalorder %s20, 1
      %p45 = por %p43, %p44
      %p46 = scmp.ne.s32.totalorder %s37, %s38
      %p47 = scmp.eq.s32.totalorder %s20, 0
      %p48 = por %p46, %p47
      %p49 = scmp.ne.s32.totalorder %s37, %s38
      %p50 = scmp.eq.s32.totalorder %s21, 1
      %p51 = por %p49, %p50
      %p53 = scmp.ne.s32.totalorder %s38, %s52
      %p54 = scmp.eq.s32.totalorder %s21, 0
      %p55 = por %p53, %p54
      %s56 = ssub.s32 %s22, %s34
      %s57 = ssub.s32 %s23, %s30
      %s58 = sor.u32 %s56, %s57
      %p59 = scmp.eq.s32.totalorder %s58, 0
      %s61 = sadd.s32 %s60, 1
      %s62 = scalar_select %p59, %s60, %s61
      %p65 = pneg %p59
      %p66 = scmp.eq.s32.totalorder %s15, 1
      %p67 = por %p65, %p66
      %p68 = scmp.ne.s32.totalorder %s60, %s63
      %p69 = scmp.eq.s32.totalorder %s15, 0
      %p70 = por %p68, %p69
      %p71 = scmp.ne.s32.totalorder %s60, %s63
      %p72 = scmp.eq.s32.totalorder %s20, 1
      %p73 = por %p71, %p72
      %p74 = scmp.ne.s32.totalorder %s63, %s64
      %p75 = scmp.eq.s32.totalorder %s20, 0
      %p76 = por %p74, %p75
      %p77 = scmp.ne.s32.totalorder %s63, %s64
      %p78 = scmp.eq.s32.totalorder %s21, 1
      %p79 = por %p77, %p78
      %p81 = scmp.ne.s32.totalorder %s64, %s80
      %p82 = scmp.eq.s32.totalorder %s21, 0
      %p83 = por %p81, %p82
      %s84 = ssub.s32 %s22, %s34
      %s85 = ssub.s32 %s23, %s30
      %s86 = sor.u32 %s84, %s85
      %p87 = scmp.eq.s32.totalorder %s86, 0
      %s89 = sadd.s32 %s88, 1
      %s90 = scalar_select %p87, %s88, %s89
      %p93 = pneg %p87
      %p94 = scmp.eq.s32.totalorder %s15, 1
      %p95 = por %p93, %p94
      %p96 = scmp.ne.s32.totalorder %s88, %s91
      %p97 = scmp.eq.s32.totalorder %s15, 0
      %p98 = por %p96, %p97
      %p99 = scmp.ne.s32.totalorder %s88, %s91
      %p100 = scmp.eq.s32.totalorder %s20, 1
      %p101 = por %p99, %p100
      %p102 = scmp.ne.s32.totalorder %s91, %s92
      %p103 = scmp.eq.s32.totalorder %s20, 0
      %p104 = por %p102, %p103
      %p105 = scmp.ne.s32.totalorder %s91, %s92
      %p106 = scmp.eq.s32.totalorder %s21, 1
      %p107 = por %p105, %p106
      %p109 = scmp.ne.s32.totalorder %s92, %s108
      %p110 = scmp.eq.s32.totalorder %s21, 0
      %p111 = por %p109, %p110
      %p112 = scmp.le.s32.totalorder 1, %s15
      %p113 = scmp.lt.s32.totalorder %s15, 3
      %p114 = pnand %p112, %p113
      %p115 = pneg %p114
      // Predicated region
      $region9: #{spatial_attention.1} parent=5 // pred_check
        _
      $region10: #{spatial_attention.1} parent=5 // pred_check_branch
        %117 = sbr.rel (%p114) target = $region12
      $region11: #{spatial_attention.1} parent=5 // pred_region
        %s118 = ssub.s32 %s15, 1
        // Predicated region
        $region13: #{spatial_attention.1} parent=11 // pred_check
          %p119 = pneg %p48
        $region14: #{spatial_attention.1} parent=11 // pred_check_branch
          %121 = sbr.rel (%p119) target = $region16
        $region15: #{spatial_attention.1} parent=11 // pred_region
          %123 = vsyncadd [#allocation5], 0
          %s125 = sshll.u32 %s0, 4
          %s126 = int_to_ptr.vmem [resolvable:$true] %s125
          %128 = dma.vmem_to_smem %s126, 16, [#allocation2], [#allocation5]
        $region16: #{spatial_attention.1} parent=11 // pred_fallthru
          _
      $region12: #{spatial_attention.1} parent=5 // pred_fallthru
        _
      %p129 = scmp.lt.s32.totalorder %s15, 2
      // Predicated region
      $region17: #{spatial_attention.1} parent=5 // pred_check
        %p130 = pneg %p129
      $region18: #{spatial_attention.1} parent=5 // pred_check_branch
        %132 = sbr.rel (%p130) target = $region20
      $region19: #{spatial_attention.1} parent=5 // pred_region
        // Predicated region
        $region21: #{spatial_attention.1} parent=19 // pred_check
          %p133 = pneg %p70
        $region22: #{spatial_attention.1} parent=19 // pred_check_branch
          %135 = sbr.rel (%p133) target = $region24
        $region23: #{spatial_attention.1} parent=19 // pred_region
          %s136 = sand.u32 %s60, 1
          %s137 = scalar_lea.sflag [#allocation3], %s136
          %s138 = sand.u32 %s60, 1
          %s139 = smul.addr %s138, 64
          %s140 = scalar_lea.vmem [#allocation6], %s139
          %s141 = smul.u32 2, %s23
          %143 = vsyncadd %s137, 0
          %s144 = smul.addr %s22, 8
          %s145 = sadd.s32 %s141, %s144
          %s146 = smul.addr %s145, 8
          %s147 = scalar_lea.hbm %s1, %s146
          %s148 = sshll.u32 %s147, 4
          %s149 = int_to_ptr.hbm [resolvable:$true] %s148
          %s150 = sshll.u32 %s140, 4
          %s151 = int_to_ptr.vmem [resolvable:$true] %s150
          %156 = dma.hbm_to_vmem [thread:$0]  %s149, 1024, %s151, %s137, 128, 128, 8
        $region24: #{spatial_attention.1} parent=19 // pred_fallthru
          _
      $region20: #{spatial_attention.1} parent=5 // pred_fallthru
        _
      %p157 = scmp.le.s32.totalorder 1, %s15
      %p158 = scmp.lt.s32.totalorder %s15, 3
      %p159 = pnand %p157, %p158
      %p160 = pneg %p159
      // Predicated region
      $region25: #{spatial_attention.1} parent=5 // pred_check
        _
      $region26: #{spatial_attention.1} parent=5 // pred_check_branch
        %162 = sbr.rel (%p159) target = $region28
      $region27: #{spatial_attention.1} parent=5 // pred_region
        %s163 = ssub.s32 %s15, 1
        // Predicated region
        $region29: #{spatial_attention.1} parent=27 // pred_check
          %p164 = pneg %p48
        $region30: #{spatial_attention.1} parent=27 // pred_check_branch
          %166 = sbr.rel (%p164) target = $region32
        $region31: #{spatial_attention.1} parent=27 // pred_region
          %168 = dma.done [#allocation5], 16
        $region32: #{spatial_attention.1} parent=27 // pred_fallthru
          _
        %s169 = sand.u32 %s63, 1
        %s170 = scalar_lea.sflag [#allocation3], %s169
        %s171 = sand.u32 %s63, 1
        %s172 = smul.addr %s171, 64
        %s173 = scalar_lea.vmem [#allocation6], %s172
        // Predicated region
        $region33: #{spatial_attention.1} parent=27 // pred_check
          %p174 = pneg %p76
        $region34: #{spatial_attention.1} parent=27 // pred_check_branch
          %176 = sbr.rel (%p174) target = $region36
        $region35: #{spatial_attention.1} parent=27 // pred_region
          %178 = dma.done %s170, 1024
        $region36: #{spatial_attention.1} parent=27 // pred_fallthru
          _
        %179 = sfence
        %p180 = pneg %p48
        %p181 = pneg %p45
        %s182 = sand.u32 %s63, 1
        %s183 = scalar_lea.sflag [#allocation3], %s182
        %s184 = sand.u32 %s63, 1
        %s185 = smul.addr %s184, 64
        %s186 = scalar_lea.vmem [#allocation6], %s185
        %p187 = pneg %p76
        %p188 = pneg %p73
        %p189 = pneg %p104
        %p190 = pneg %p101
        %s191 = sand.u32 %s91, 1
        %s192 = scalar_lea.sflag [#allocation4], %s191
        %s193 = sand.u32 %s91, 1
        %s194 = smul.addr %s193, 32
        %s195 = scalar_lea.vmem [#allocation7], %s194
        %s196 = smul.u32 2, %s25
        %s197 = smul.u32 2, %s25
        %v198 = vld [vmem:[%s173] sm:$0xff]
        %v199 = vld [vmem:[%s173 + $0x8] sm:$0xff]
        %v200 = vld [vmem:[%s173 + $0x10] sm:$0xff]
        %v201 = vld [vmem:[%s173 + $0x18] sm:$0xff]
        %v202 = vld [vmem:[%s173 + $0x20] sm:$0xff]
        %v203 = vld [vmem:[%s173 + $0x28] sm:$0xff]
        %v204 = vld [vmem:[%s173 + $0x30] sm:$0xff]
        %v205 = vld [vmem:[%s173 + $0x38] sm:$0xff]
        %vm206 = vcmask 130048
        %v207 = vsel %vm206, %v198, 0.0
        %v208 = vsel %vm206, %v200, 0.0
        %v209 = vadd.f32 %v207, %v208
        %v210 = vsel %vm206, %v202, 0.0
        %v211 = vadd.f32 %v209, %v210
        %v212 = vsel %vm206, %v204, 0.0
        %v213 = vadd.f32 %v211, %v212
        %v214 = vsel %vm206, %v199, 0.0
        %v215 = vsel %vm206, %v201, 0.0
        %v216 = vadd.f32 %v214, %v215
        %v217 = vsel %vm206, %v203, 0.0
        %v218 = vadd.f32 %v216, %v217
        %v219 = vsel %vm206, %v205, 0.0
        %v220 = vadd.f32 %v218, %v219
        %v221 = vsel %vm206, %v198, -inf
        %v222 = vsel %vm206, %v200, -inf
        %v223 = vsel %vm206, %v202, -inf
        %v224 = vmax.f32 %v221, %v223
        %v225 = vsel %vm206, %v204, -inf
        %v226 = vmax.f32 %v222, %v225
        %v227 = vmax.f32 %v224, %v226
        %v228 = vsel %vm206, %v199, -inf
        %v229 = vsel %vm206, %v201, -inf
        %v230 = vsel %vm206, %v203, -inf
        %v231 = vmax.f32 %v228, %v230
        %v232 = vsel %vm206, %v205, -inf
        %v233 = vmax.f32 %v229, %v232
        %v234 = vmax.f32 %v231, %v233
        %s235 = sld [smem:[#allocation2]]
        %s236 = sld [smem:[#allocation2 + $0x1]]
        %s237 = sld [smem:[#allocation2 + $0x2]]
        %s238 = sld [smem:[#allocation2 + $0x3]]
        %s239 = sld [smem:[#allocation2 + $0x4]]
        %s240 = sld [smem:[#allocation2 + $0x5]]
        %v241 = vstv %s235
        %v242 = vmul.f32 %v241, %v213
        %v243 = vmul.f32 %v241, %v220
        %v244 = vstv %s236
        %v245 = vmul.f32 %v244, %v227
        %v246 = vmul.f32 %v244, %v234
        %v247 = vadd.f32 %v242, %v245
        %v248 = vadd.f32 %v243, %v246
        %v249 = vstv %s239
        %v250 = vadd.f32 %v247, %v249
        %v251 = vadd.f32 %v248, %v249
        %v252 = vstv %s237
        %v253 = vmul.f32 %v252, %v213
        %v254 = vmul.f32 %v252, %v220
        %v255 = vstv %s238
        %v256 = vmul.f32 %v255, %v227
        %v257 = vmul.f32 %v255, %v234
        %v258 = vadd.f32 %v253, %v256
        %v259 = vadd.f32 %v254, %v257
        %v260 = vstv %s240
        %v261 = vadd.f32 %v258, %v260
        %v262 = vadd.f32 %v259, %v260
        %v263 = vmax.f32 %v250, 0.0
        %v264 = vmax.f32 %v251, 0.0
        %v265 = vxor.u32 %v263, 2147483648
        %v266 = vxor.u32 %v264, 2147483648
        %v267 = vmul.f32 %v265, 1.442695
        %v268 = vpow.pop %v267
        %v269 = vmul.f32 %v266, 1.442695
        %v270 = vpow.pop %v269
        %v271 = vadd.f32 %v268, 1.0
        %v272 = vadd.f32 %v270, 1.0
        %v273 = vrcp.pop %v271
        %v274 = vmul.f32 %v271, %v273
        %v275 = vsub.f32 1.0, %v274
        %v276 = vmul.f32 %v273, %v275
        %v277 = vadd.f32 %v273, %v276
        %vm278 = vweird.f32 %v271
        %vm279 = vweird.f32 %v273
        %vm280 = vmor %vm278, %vm279
        %v281 = vsel %vm280, %v273, %v277
        %v282 = vand.u32 2147483647, %v271
        %vm283 = vcmp.eq.f32.partialorder %v282, 8.507059e+37
        %v284 = vand.u32 %v271, 2147483648
        %v285 = vor.u32 1.1754944e-38, %v284
        %v286 = vsel %vm283, %v285, %v281
        %v287 = vmul.f32 1.0, %v286
        %v288 = vrcp.pop %v272
        %v289 = vmul.f32 %v272, %v288
        %v290 = vsub.f32 1.0, %v289
        %v291 = vmul.f32 %v288, %v290
        %v292 = vadd.f32 %v288, %v291
        %vm293 = vweird.f32 %v272
        %vm294 = vweird.f32 %v288
        %vm295 = vmor %vm293, %vm294
        %v296 = vsel %vm295, %v288, %v292
        %v297 = vand.u32 2147483647, %v272
        %vm298 = vcmp.eq.f32.partialorder %v297, 8.507059e+37
        %v299 = vand.u32 %v272, 2147483648
        %v300 = vor.u32 1.1754944e-38, %v299
        %v301 = vsel %vm298, %v300, %v296
        %v302 = vmul.f32 1.0, %v301
        %303 = vst.msk [vmem:[%s195] sm:$0xff] %vm206, %v287
        %304 = vst.msk [vmem:[%s195 + $0x8] sm:$0xff] %vm206, %v302
        %v305 = vmax.f32 %v261, 0.0
        %v306 = vmax.f32 %v262, 0.0
        %v307 = vxor.u32 %v305, 2147483648
        %v308 = vxor.u32 %v306, 2147483648
        %v309 = vmul.f32 %v307, 1.442695
        %v310 = vpow.pop %v309
        %v311 = vmul.f32 %v308, 1.442695
        %v312 = vpow.pop %v311
        %v313 = vadd.f32 %v310, 1.0
        %v314 = vadd.f32 %v312, 1.0
        %v315 = vrcp.pop %v313
        %v316 = vmul.f32 %v313, %v315
        %v317 = vsub.f32 1.0, %v316
        %v318 = vmul.f32 %v315, %v317
        %v319 = vadd.f32 %v315, %v318
        %vm320 = vweird.f32 %v313
        %vm321 = vweird.f32 %v315
        %vm322 = vmor %vm320, %vm321
        %v323 = vsel %vm322, %v315, %v319
        %v324 = vand.u32 2147483647, %v313
        %vm325 = vcmp.eq.f32.partialorder %v324, 8.507059e+37
        %v326 = vand.u32 %v313, 2147483648
        %v327 = vor.u32 1.1754944e-38, %v326
        %v328 = vsel %vm325, %v327, %v323
        %v329 = vmul.f32 1.0, %v328
        %v330 = vrcp.pop %v314
        %v331 = vmul.f32 %v314, %v330
        %v332 = vsub.f32 1.0, %v331
        %v333 = vmul.f32 %v330, %v332
        %v334 = vadd.f32 %v330, %v333
        %vm335 = vweird.f32 %v314
        %vm336 = vweird.f32 %v330
        %vm337 = vmor %vm335, %vm336
        %v338 = vsel %vm337, %v330, %v334
        %v339 = vand.u32 2147483647, %v314
        %vm340 = vcmp.eq.f32.partialorder %v339, 8.507059e+37
        %v341 = vand.u32 %v314, 2147483648
        %v342 = vor.u32 1.1754944e-38, %v341
        %v343 = vsel %vm340, %v342, %v338
        %v344 = vmul.f32 1.0, %v343
        %s345 = scalar_lea.vmem %s195, 16 [#allocation7]
        %346 = vst.msk [vmem:[%s345] sm:$0xff] %vm206, %v329
        %347 = vst.msk [vmem:[%s345 + $0x8] sm:$0xff] %vm206, %v344
        %s348 = sand.u32 %s91, 1
        %s349 = scalar_lea.sflag [#allocation4], %s348
        %s350 = sand.u32 %s91, 1
        %s351 = smul.addr %s350, 32
        %s352 = scalar_lea.vmem [#allocation7], %s351
        // Predicated region
        $region37: #{spatial_attention.1} parent=27 // pred_check
          %p353 = pneg %p101
        $region38: #{spatial_attention.1} parent=27 // pred_check_branch
          %355 = sbr.rel (%p353) target = $region40
        $region39: #{spatial_attention.1} parent=27 // pred_region
          %s356 = smul.u32 2, %s25
          %358 = vsyncadd %s349, 0
          %s359 = smul.addr %s24, 4
          %s360 = sadd.s32 %s356, %s359
          %s361 = smul.addr %s360, 8
          %s362 = scalar_lea.hbm %s2, %s361
          %s363 = sshll.u32 %s352, 4
          %s364 = int_to_ptr.vmem [resolvable:$true] %s363
          %s365 = sshll.u32 %s362, 4
          %s366 = int_to_ptr.hbm [resolvable:$true] %s365
          %371 = dma.vmem_to_hbm [thread:$0]  %s364, 512, %s366, %s349, 128, 128, 8
        $region40: #{spatial_attention.1} parent=27 // pred_fallthru
          _
      $region28: #{spatial_attention.1} parent=5 // pred_fallthru
        _
      %p372 = scmp.le.s32.totalorder 2, %s15
      // Predicated region
      $region41: #{spatial_attention.1} parent=5 // pred_check
        %p373 = pneg %p372
      $region42: #{spatial_attention.1} parent=5 // pred_check_branch
        %375 = sbr.rel (%p373) target = $region44
      $region43: #{spatial_attention.1} parent=5 // pred_region
        %s376 = ssub.s32 %s15, 2
        // Predicated region
        $region45: #{spatial_attention.1} parent=43 // pred_check
          %p377 = pneg %p107
        $region46: #{spatial_attention.1} parent=43 // pred_check_branch
          %379 = sbr.rel (%p377) target = $region48
        $region47: #{spatial_attention.1} parent=43 // pred_region
          %s380 = sand.u32 %s92, 1
          %s381 = scalar_lea.sflag [#allocation4], %s380
          %s382 = sand.u32 %s92, 1
          %s383 = smul.addr %s382, 32
          %s384 = scalar_lea.vmem [#allocation7], %s383
          %386 = dma.done %s381, 512
        $region48: #{spatial_attention.1} parent=43 // pred_fallthru
          _
      $region44: #{spatial_attention.1} parent=5 // pred_fallthru
        _
    $region6: #{spatial_attention.1} parent=1 // loop_footer
      %s19 = sadd.s32 1, %s15
    $region7: #{spatial_attention.1} parent=1 // loop_footer_branch
      %14 = sbr.rel target = $region3
    $region8: #{spatial_attention.1} parent=1 // loop_exit
      _
    %387 = vsyncpa [#allocation3], 1
    %s388 = scalar_lea.sflag [#allocation3], 1
    %389 = vsyncpa %s388, 1
    %390 = vsyncpa [#allocation4], 1
    %s391 = scalar_lea.sflag [#allocation4], 1
    %392 = vsyncpa %s391, 1
    %393 = vsyncpa [#allocation5], 1
    %s394 = scalar_lea.sflag [#allocation5], 1
    %395 = vsyncpa %s394, 1

</llo_original>
